<compile_context>
chip_gen: v7x
topology: tpu7x:2x2x1
jax: 0.10.0
libtpu: 0.0.40
codegen_flags: <defaults>
</compile_context>

<pallas_src>
import functools

import jax
import jax.numpy as jnp
from jax.experimental import pallas as pl
from jax.experimental.pallas import tpu as pltpu

_LANE = 128
_SUBLANE_BF16 = 16           # bf16 packs 16 sublanes per vreg
_IN_FEATURES = 256
_SMALL_B = 256               # below this, launch/pad/slice overhead dominates
_DEFAULT_TILE_B = 1024


def _cdiv(a, b):
    return -(-a // b)


def _round_up(a, m):
    return _cdiv(a, m) * m


# --------------------------------------------------------------------------- #
# One-time parameter prep (hoisted out of the per-call path).
# --------------------------------------------------------------------------- #
def prepare_classifier_params(weight, bias, compute_dtype=jnp.bfloat16):
    """weight [C, 256], bias [C] -> (w_t [256, c_pad] bf16, b_p [1, c_pad] f32).

    Pre-transposed, lane-padded (c_pad = round_up(C, 128)) and pre-cast so the
    per-forward path does no layout work. Call once at init / param update.
    """
    C, K = weight.shape
    c_pad = _round_up(C, _LANE)
    w_t = jnp.zeros((K, c_pad), compute_dtype).at[:, :C].set(
        weight.T.astype(compute_dtype))
    b_p = jnp.zeros((1, c_pad), jnp.float32).at[:, :C].set(
        bias.astype(jnp.float32))
    return w_t, b_p


# --------------------------------------------------------------------------- #
# Kernel: (tb, K) bf16 @ (K, c_pad) bf16 -> f32 accumulate, f32 bias, f32 out.
# --------------------------------------------------------------------------- #
def _linear_bias_kernel(x_ref, w_ref, b_ref, o_ref):
    acc = jnp.dot(x_ref[...], w_ref[...], preferred_element_type=jnp.float32)
    o_ref[...] = (acc + b_ref[...]).astype(o_ref.dtype)


def _choose_batch_tile(B, tile_b):
    # >= 2 (and even) grid steps so v7x's two TensorCores both get work once
    # the Pallas path is taken; size the tile from ceil(B / n_tiles) so
    # batch-padding waste stays bounded (no B=520 -> 1024 blowups).
    n = max(2, _cdiv(B, tile_b))
    n += n % 2
    tb = _round_up(_cdiv(B, n), _SUBLANE_BF16)
    steps = _cdiv(B, tb)
    return tb, steps, steps * tb


def _linear_padded(x, w_t, b_p, tile_b=_DEFAULT_TILE_B):
    """x [B, 256] -> logits [B, c_pad] float32 (lane-padded columns kept)."""
    B, K = x.shape
    Kw, c_pad = w_t.shape
    assert K == Kw, f"feature mismatch: {K} vs {Kw}"

    x_c = x.astype(w_t.dtype)                       # bf16 on the dominant stream

    if B < _SMALL_B:
        # Tiny batch: one fused XLA dot+bias; Pallas launch overhead not worth it.
        acc = jnp.dot(x_c, w_t, preferred_element_type=jnp.float32)
        return acc + b_p

    tb, steps, b_pad = _choose_batch_tile(B, tile_b)
    x_p = x_c if b_pad == B else jnp.zeros((b_pad, K), x_c.dtype).at[:B].set(x_c)

    in_itemsize = jnp.dtype(w_t.dtype).itemsize
    cost = pl.CostEstimate(
        flops=2 * b_pad * K * c_pad,
        transcendentals=0,
        bytes_accessed=(b_pad * K * in_itemsize
                        + K * c_pad * in_itemsize
                        + c_pad * 4
                        + b_pad * c_pad * 4),
    )

    out = pl.pallas_call(
        _linear_bias_kernel,
        out_shape=jax.ShapeDtypeStruct((b_pad, c_pad), jnp.float32),
        grid=(steps,),
        in_specs=[
            pl.BlockSpec((tb, K), lambda i: (i, 0)),      # x streams over batch
            pl.BlockSpec((K, c_pad), lambda i: (0, 0)),   # weight resident in VMEM
            pl.BlockSpec((1, c_pad), lambda i: (0, 0)),   # bias resident in VMEM
        ],
        out_specs=pl.BlockSpec((tb, c_pad), lambda i: (i, 0)),
        compiler_params=pltpu.CompilerParams(
            dimension_semantics=("parallel",),            # shard batch over TCs
        ),
        cost_estimate=cost,
    )(x_p, w_t, b_p)

    return out if b_pad == B else out[:B]


# --------------------------------------------------------------------------- #
# GradReverse-aware linear: custom VJP so training matches the PyTorch module.
# --------------------------------------------------------------------------- #
@functools.partial(jax.custom_vjp, nondiff_argnums=(3, 4))
def _gradrev_linear(x, w_t, b_p, reverse, lambd):
    return _linear_padded(x, w_t, b_p)


def _gradrev_linear_fwd(x, w_t, b_p, reverse, lambd):
    return _linear_padded(x, w_t, b_p), (x, w_t)


def _gradrev_linear_bwd(reverse, lambd, res, g):
    x, w_t = res
    g32 = g.astype(jnp.float32)
    dx = jnp.dot(g32.astype(w_t.dtype), w_t.T, preferred_element_type=jnp.float32)
    if reverse:                                    # GradReverse flips dx only
        dx = dx * (-lambd)
    dw_t = jnp.dot(x.astype(jnp.float32).T, g32,
                   preferred_element_type=jnp.float32).astype(w_t.dtype)
    db_p = jnp.sum(g32, axis=0, keepdims=True)
    return dx.astype(x.dtype), dw_t, db_p


_gradrev_linear.defvjp(_gradrev_linear_fwd, _gradrev_linear_bwd)


def classifier_forward(x, w_t, b_p, class_num=None, reverse=False, lambd=1.0):
    """Forward of `Classifier` on prepared params: x @ W^T + b.

    If class_num is None, the lane-padded [B, 128k] logits are returned so a
    downstream softmax/argmax/loss can consume them without an extra slice copy.
    """
    out = _gradrev_linear(x, w_t, b_p, bool(reverse), float(lambd))
    if class_num is None:
        return out
    return out[:, :class_num]


class Classifier:
    """Forward-equivalent stand-in for the PyTorch module."""

    def __init__(self, class_num, weight, bias, compute_dtype=jnp.bfloat16):
        self.class_num = class_num
        self.lambd = 1.0
        self.w_t, self.b_p = prepare_classifier_params(weight, bias, compute_dtype)

    def set_lambda(self, lambd):
        self.lambd = lambd

    def __call__(self, x, reverse=False):
        return classifier_forward(x, self.w_t, self.b_p, self.class_num,
                                  reverse=reverse, lambd=self.lambd)


if __name__ == "__main__":
    class_num = 10
    in_features = _IN_FEATURES

    key = jax.random.PRNGKey(0)
    kx_small, kx_big, kw, kb = jax.random.split(key, 4)

    # PyTorch nn.Linear-style parameters: weight [class_num, 256], bias [class_num].
    bound = 1.0 / (in_features ** 0.5)
    weight = jax.random.uniform(kw, (class_num, in_features), jnp.float32, -bound, bound)
    bias = jax.random.uniform(kb, (class_num,), jnp.float32, -bound, bound)

    clf = Classifier(class_num, weight, bias)

    # Small batch (module-sized demo): takes the fused-XLA small-B path.
    x_small = jax.random.normal(kx_small, (8, in_features), jnp.float32)
    out_small = jax.block_until_ready(clf(x_small))

    # Larger batch: exercises the Pallas kernel (2 grid steps, bf16 streams).
    x_big = jax.random.normal(kx_big, (512, in_features), jnp.float32)
    out_big = jax.block_until_ready(clf(x_big, reverse=True))  # forward no-op

    # References.
    def ref_f32(x):
        return x @ weight.T + bias

    def ref_bf16(x):
        return (jnp.dot(x.astype(jnp.bfloat16), clf.w_t,
                        preferred_element_type=jnp.float32)
                + clf.b_p)[:, :class_num]

    assert out_small.shape == (8, class_num)
    assert out_big.shape == (512, class_num)
    # Tight check vs a bf16-matched reference (same compute dtype / accumulation).
    assert jnp.allclose(out_small, ref_bf16(x_small), atol=1e-4, rtol=1e-4)
    assert jnp.allclose(out_big, ref_bf16(x_big), atol=1e-4, rtol=1e-4)
    # Loose check vs full-f32 ground truth (bf16 input quantization only).
    assert jnp.allclose(out_small, ref_f32(x_small), atol=3e-2, rtol=3e-2)
    assert jnp.allclose(out_big, ref_f32(x_big), atol=3e-2, rtol=3e-2)

    print("KERNEL_OK")
</pallas_src>

<mosaic_0001>
module attributes {stable_mosaic.version = 11 : i64} {
  func.func @_linear_bias_kernel(%arg0: i32, %arg1: memref<256x256xbf16, #tpu.memory_space<vmem>>, %arg2: memref<256x128xbf16, #tpu.memory_space<vmem>>, %arg3: memref<1x128xf32, #tpu.memory_space<vmem>>, %arg4: memref<256x128xf32, #tpu.memory_space<vmem>>) attributes {dimension_semantics = [#tpu.dimension_semantics<parallel>], iteration_bounds = array<i64: 2>, scalar_prefetch = 0 : i64, scratch_operands = 0 : i64, tpu.core_type = #tpu.core_type<tc>, window_params = [{transform_indices = @transform_0, window_bounds = array<i64: 256, 256>}, {pipeline_mode = #tpu.pipeline_mode<synchronous>, transform_indices = @transform_1, window_bounds = array<i64: 256, 128>}, {pipeline_mode = #tpu.pipeline_mode<synchronous>, transform_indices = @transform_2, window_bounds = array<i64: 1, 128>}, {transform_indices = @transform_3, window_bounds = array<i64: 256, 128>}]} {
    %c0 = arith.constant 0 : index
    %c0_0 = arith.constant 0 : index
    %0 = vector.load %arg1[%c0, %c0_0] : memref<256x256xbf16, #tpu.memory_space<vmem>>, vector<256x256xbf16>
    %c0_1 = arith.constant 0 : index
    %c0_2 = arith.constant 0 : index
    %1 = vector.load %arg2[%c0_1, %c0_2] : memref<256x128xbf16, #tpu.memory_space<vmem>>, vector<256x128xbf16>
    %cst = arith.constant dense<0.000000e+00> : vector<256x128xf32>
    %2 = tpu.matmul %0, %1, %cst {dimension_numbers = #tpu.dot_dimension_numbers<[1], [0], [0], [1], [0, 0, 1, 1], [], []>} : vector<256x256xbf16>, vector<256x128xbf16>, vector<256x128xf32> -> vector<256x128xf32>
    %c0_3 = arith.constant 0 : index
    %c0_4 = arith.constant 0 : index
    %3 = vector.load %arg3[%c0_3, %c0_4] : memref<1x128xf32, #tpu.memory_space<vmem>>, vector<1x128xf32>
    %4 = vector.broadcast %3 : vector<1x128xf32> to vector<256x128xf32>
    %5 = arith.addf %2, %4 : vector<256x128xf32>
    %c0_5 = arith.constant 0 : index
    %c0_6 = arith.constant 0 : index
    %6 = vector.load %arg4[%c0_5, %c0_6] : memref<256x128xf32, #tpu.memory_space<vmem>>, vector<256x128xf32>
    tpu.vector_store %arg4[%c0_5, %c0_6], %5 {strides = array<i32>} : memref<256x128xf32, #tpu.memory_space<vmem>>, vector<256x128xf32>,
    return
  }
  func.func @transform_0(%arg0: i32) -> (i32, i32) {
    %c0_i32 = arith.constant 0 : i32
    %c0_i32_0 = arith.constant 0 : i32
    return %arg0, %c0_i32 : i32, i32
  }
  func.func @transform_1(%arg0: i32) -> (i32, i32) {
    %c0_i32 = arith.constant 0 : i32
    %c0_i32_0 = arith.constant 0 : i32
    %c0_i32_1 = arith.constant 0 : i32
    return %c0_i32, %c0_i32_0 : i32, i32
  }
  func.func @transform_2(%arg0: i32) -> (i32, i32) {
    %c0_i32 = arith.constant 0 : i32
    %c0_i32_0 = arith.constant 0 : i32
    %c0_i32_1 = arith.constant 0 : i32
    return %c0_i32, %c0_i32_0 : i32, i32
  }
  func.func @transform_3(%arg0: i32) -> (i32, i32) {
    %c0_i32 = arith.constant 0 : i32
    %c0_i32_0 = arith.constant 0 : i32
    return %arg0, %c0_i32 : i32, i32
  }
}

</mosaic_0001>

<llo_original>
// kernel: tpu_custom_call.1
$region0: #{tpu_custom_call.1}
  #allocation0 [shape = 'u32[]', space=smem, size = 0x4, offset = 0x4, fixed_abs, tag = 'smem constant byte address 0x4 - core index']
  #allocation1 [shape = 'u32[144,128]{1,0:T(1,128)}', space=vmem, size = 0x12000, scoped, tag = 'internal scratch']
  %s0 = inlined_call_operand.hbm [shape: bf16[512,256], index: 0, kind: input, shape index: {}]
  %s1 = inlined_call_operand.hbm [shape: bf16[256,128], index: 1, kind: input, shape index: {}]
  %s2 = inlined_call_operand.vmem [shape: f32[1,128], index: 2, kind: input, shape index: {}]
  %s3 = inlined_call_operand.hbm [shape: f32[512,128], index: 3, kind: output, shape index: {}]
  %s4 = sld [smem:[#allocation0]]
  $region53: #{tpu_custom_call.1} parent=0
    _
  %s6 = ssub.s32 1, %s4
  %s7 = scalar_select 0, %s6, %s4
  $region1: #{tpu_custom_call.1} parent=0
    #allocation2 [shape = 'u8[262144]{0}', space=vmem, size = 0x40000, scoped, tag = 'input window, operand 0']
    #allocation3 [shape = 's32[2]{0}', space=sflag, size = 0x8, scoped, tag = 'scoped memory for tpu_custom_call.1']
    #allocation4 [shape = 's32[2]{0}', space=sflag, size = 0x8, scoped, tag = 'scoped memory for tpu_custom_call.1']
    #allocation5 [shape = 'u8[65536]{0}', space=vmem, size = 0x10000, scoped, tag = 'input window, operand 1, single buffered']
    #allocation6 [shape = 's32[1]{0}', space=sflag, size = 0x4, scoped, tag = 'scoped memory for tpu_custom_call.1']
    #allocation7 [shape = 'u8[262144]{0}', space=vmem, size = 0x40000, scoped, tag = 'output window, operand 0']
    %8 = vsyncpa [#allocation3], 0
    %s9 = scalar_lea.sflag [#allocation3], 1
    %10 = vsyncpa %s9, 0
    %11 = vsyncpa [#allocation6], 0
    %12 = vsyncpa [#allocation4], 0
    %s13 = scalar_lea.sflag [#allocation4], 1
    %14 = vsyncpa %s13, 0
    loop: start=0, step=1, limit=4
    $region2: #{tpu_custom_call.1} parent=1 // loop_pre_header
      _
    $region3: #{tpu_custom_call.1} parent=1 // loop_header
      %s16 = sphi 0, %s20
      %p17 = scmp.ge.s32.totalorder %s16, 4
      %s26 = sphi 0, %s28
      %s29 = sphi 0, %s26
      %s30 = sphi 0, %s29
      %s46 = sphi 0, %s30
      %s50 = sphi 0, %s50
      %s52 = sphi 0, %s50
      %s53 = sphi 0, %s52
      %s67 = sphi 0, %s53
      %s71 = sphi 0, %s71
      %s73 = sphi 0, %s71
      %s74 = sphi 0, %s73
      %s88 = sphi 0, %s74
      %s94 = sphi 0, %s96
      %s97 = sphi 0, %s94
      %s98 = sphi 0, %s97
      %s114 = sphi 0, %s98
    $region4: #{tpu_custom_call.1} parent=1 // loop_header_branch
      %19 = sbr.rel (%p17) target = $region8
    $region5: #{tpu_custom_call.1} parent=1 // loop_body
      %s21 = ssub.s32 %s16, 1
      %s22 = ssub.s32 %s16, 2
      %s23 = sadd.s32 %s16, 1
      %s24 = ssub.s32 %s16, %s23
      %p25 = scmp.eq.s32.totalorder %s24, 0
      %s27 = sadd.s32 %s26, 1
      %s28 = scalar_select %p25, %s26, %s27
      %p31 = pneg %p25
      %p32 = scmp.eq.s32.totalorder %s16, 1
      %p33 = por %p31, %p32
      %p34 = scmp.ne.s32.totalorder %s26, %s29
      %p35 = scmp.eq.s32.totalorder %s16, 0
      %p36 = por %p34, %p35
      %p37 = scmp.ne.s32.totalorder %s26, %s29
      %p38 = scmp.eq.s32.totalorder %s21, 1
      %p39 = por %p37, %p38
      %p40 = scmp.ne.s32.totalorder %s29, %s30
      %p41 = scmp.eq.s32.totalorder %s21, 0
      %p42 = por %p40, %p41
      %p43 = scmp.ne.s32.totalorder %s29, %s30
      %p44 = scmp.eq.s32.totalorder %s22, 1
      %p45 = por %p43, %p44
      %p47 = scmp.ne.s32.totalorder %s30, %s46
      %p48 = scmp.eq.s32.totalorder %s22, 0
      %p49 = por %p47, %p48
      %s51 = sadd.s32 %s50, 1
      %p54 = scmp.eq.s32.totalorder %s16, 1
      %p55 = scmp.ne.s32.totalorder %s50, %s52
      %p56 = scmp.eq.s32.totalorder %s16, 0
      %p57 = por %p55, %p56
      %p58 = scmp.ne.s32.totalorder %s50, %s52
      %p59 = scmp.eq.s32.totalorder %s21, 1
      %p60 = por %p58, %p59
      %p61 = scmp.ne.s32.totalorder %s52, %s53
      %p62 = scmp.eq.s32.totalorder %s21, 0
      %p63 = por %p61, %p62
      %p64 = scmp.ne.s32.totalorder %s52, %s53
      %p65 = scmp.eq.s32.totalorder %s22, 1
      %p66 = por %p64, %p65
      %p68 = scmp.ne.s32.totalorder %s53, %s67
      %p69 = scmp.eq.s32.totalorder %s22, 0
      %p70 = por %p68, %p69
      %s72 = sadd.s32 %s71, 1
      %p75 = scmp.eq.s32.totalorder %s16, 1
      %p76 = scmp.ne.s32.totalorder %s71, %s73
      %p77 = scmp.eq.s32.totalorder %s16, 0
      %p78 = por %p76, %p77
      %p79 = scmp.ne.s32.totalorder %s71, %s73
      %p80 = scmp.eq.s32.totalorder %s21, 1
      %p81 = por %p79, %p80
      %p82 = scmp.ne.s32.totalorder %s73, %s74
      %p83 = scmp.eq.s32.totalorder %s21, 0
      %p84 = por %p82, %p83
      %p85 = scmp.ne.s32.totalorder %s73, %s74
      %p86 = scmp.eq.s32.totalorder %s22, 1
      %p87 = por %p85, %p86
      %p89 = scmp.ne.s32.totalorder %s74, %s88
      %p90 = scmp.eq.s32.totalorder %s22, 0
      %p91 = por %p89, %p90
      %s92 = ssub.s32 %s16, %s23
      %p93 = scmp.eq.s32.totalorder %s92, 0
      %s95 = sadd.s32 %s94, 1
      %s96 = scalar_select %p93, %s94, %s95
      %p99 = pneg %p93
      %p100 = scmp.eq.s32.totalorder %s16, 1
      %p101 = por %p99, %p100
      %p102 = scmp.ne.s32.totalorder %s94, %s97
      %p103 = scmp.eq.s32.totalorder %s16, 0
      %p104 = por %p102, %p103
      %p105 = scmp.ne.s32.totalorder %s94, %s97
      %p106 = scmp.eq.s32.totalorder %s21, 1
      %p107 = por %p105, %p106
      %p108 = scmp.ne.s32.totalorder %s97, %s98
      %p109 = scmp.eq.s32.totalorder %s21, 0
      %p110 = por %p108, %p109
      %p111 = scmp.ne.s32.totalorder %s97, %s98
      %p112 = scmp.eq.s32.totalorder %s22, 1
      %p113 = por %p111, %p112
      %p115 = scmp.ne.s32.totalorder %s98, %s114
      %p116 = scmp.eq.s32.totalorder %s22, 0
      %p117 = por %p115, %p116
      %p118 = scmp.le.s32.totalorder 1, %s16
      %p119 = scmp.lt.s32.totalorder %s16, 3
      %p120 = pnand %p118, %p119
      %p121 = pneg %p120
      // Predicated region
      $region9: #{tpu_custom_call.1} parent=5 // pred_check
        _
      $region10: #{tpu_custom_call.1} parent=5 // pred_check_branch
        %123 = sbr.rel (%p120) target = $region12
      $region11: #{tpu_custom_call.1} parent=5 // pred_region
        %s124 = ssub.s32 %s16, 1
        // Predicated region
        $region13: #{tpu_custom_call.1} parent=11 // pred_check
          %p125 = pneg %p63
        $region14: #{tpu_custom_call.1} parent=11 // pred_check_branch
          %127 = sbr.rel (%p125) target = $region16
        $region15: #{tpu_custom_call.1} parent=11 // pred_region
          %s129 = ssub.s32 2048, 2048
          %130 = vsyncadd [#allocation6], %s129
          %s131 = sshll.u32 [#allocation5], 4
          %s132 = int_to_ptr.vmem [resolvable:$true] %s131
          %137 = dma.hbm_to_vmem [thread:$0]  %s1, 2048, %s132, [#allocation6], 64, 64, 4
        $region16: #{tpu_custom_call.1} parent=11 // pred_fallthru
          _
        // Predicated region
        $region17: #{tpu_custom_call.1} parent=11 // pred_check
          %p138 = pneg %p84
        $region18: #{tpu_custom_call.1} parent=11 // pred_check_branch
          %140 = sbr.rel (%p138) target = $region20
        $region19: #{tpu_custom_call.1} parent=11 // pred_region
          _
        $region20: #{tpu_custom_call.1} parent=11 // pred_fallthru
          _
      $region12: #{tpu_custom_call.1} parent=5 // pred_fallthru
        _
      %p141 = scmp.lt.s32.totalorder %s16, 2
      // Predicated region
      $region21: #{tpu_custom_call.1} parent=5 // pred_check
        %p142 = pneg %p141
      $region22: #{tpu_custom_call.1} parent=5 // pred_check_branch
        %144 = sbr.rel (%p142) target = $region24
      $region23: #{tpu_custom_call.1} parent=5 // pred_region
        // Predicated region
        $region25: #{tpu_custom_call.1} parent=23 // pred_check
          %p145 = pneg %p36
        $region26: #{tpu_custom_call.1} parent=23 // pred_check_branch
          %147 = sbr.rel (%p145) target = $region28
        $region27: #{tpu_custom_call.1} parent=23 // pred_region
          %s148 = sand.u32 %s26, 1
          %s149 = scalar_lea.sflag [#allocation3], %s148
          %s150 = sand.u32 %s26, 1
          %s151 = smul.addr %s150, 256
          %s152 = scalar_lea.vmem [#allocation2], %s151
          %s153 = smul.u32 32, %s16
          %s155 = ssub.s32 4096, 4096
          %156 = vsyncadd %s149, %s155
          %s157 = smul.addr %s153, 2
          %s158 = smul.addr %s157, 64
          %s159 = scalar_lea.hbm %s0, %s158
          %s160 = sshll.u32 %s152, 4
          %s161 = int_to_ptr.vmem [resolvable:$true] %s160
          %166 = dma.hbm_to_vmem [thread:$0]  %s159, 4096, %s161, %s149, 128, 128, 8
        $region28: #{tpu_custom_call.1} parent=23 // pred_fallthru
          _
      $region24: #{tpu_custom_call.1} parent=5 // pred_fallthru
        _
      %p167 = scmp.le.s32.totalorder 1, %s16
      %p168 = scmp.lt.s32.totalorder %s16, 3
      %p169 = pnand %p167, %p168
      %p170 = pneg %p169
      // Predicated region
      $region29: #{tpu_custom_call.1} parent=5 // pred_check
        _
      $region30: #{tpu_custom_call.1} parent=5 // pred_check_branch
        %172 = sbr.rel (%p169) target = $region32
      $region31: #{tpu_custom_call.1} parent=5 // pred_region
        %s173 = ssub.s32 %s16, 1
        %s174 = sand.u32 %s29, 1
        %s175 = scalar_lea.sflag [#allocation3], %s174
        %s176 = sand.u32 %s29, 1
        %s177 = smul.addr %s176, 256
        %s178 = scalar_lea.vmem [#allocation2], %s177
        // Predicated region
        $region33: #{tpu_custom_call.1} parent=31 // pred_check
          %p179 = pneg %p42
        $region34: #{tpu_custom_call.1} parent=31 // pred_check_branch
          %181 = sbr.rel (%p179) target = $region36
        $region35: #{tpu_custom_call.1} parent=31 // pred_region
          %182 = dma.done %s175, 4096
        $region36: #{tpu_custom_call.1} parent=31 // pred_fallthru
          _
        // Predicated region
        $region37: #{tpu_custom_call.1} parent=31 // pred_check
          %p183 = pneg %p63
        $region38: #{tpu_custom_call.1} parent=31 // pred_check_branch
          %185 = sbr.rel (%p183) target = $region40
        $region39: #{tpu_custom_call.1} parent=31 // pred_region
          %186 = dma.done [#allocation6], 2048
        $region40: #{tpu_custom_call.1} parent=31 // pred_fallthru
          _
        %s187 = sand.u32 %s29, 1
        %s188 = scalar_lea.sflag [#allocation3], %s187
        %s189 = sand.u32 %s29, 1
        %s190 = smul.addr %s189, 256
        %s191 = scalar_lea.vmem [#allocation2], %s190
        %p192 = pneg %p42
        %p193 = pneg %p39
        %p194 = pneg %p63
        %p195 = pneg %p60
        %p196 = pneg %p84
        %p197 = pneg %p81
        %p198 = pneg %p110
        %p199 = pneg %p107
        %s200 = sand.u32 %s97, 1
        %s201 = scalar_lea.sflag [#allocation4], %s200
        %s202 = sand.u32 %s97, 1
        %s203 = smul.addr %s202, 256
        %s204 = scalar_lea.vmem [#allocation7], %s203
        %s205 = smul.u32 32, %s21
        %s206 = smul.u32 32, %s21
        %v208 = vld [vmem:[%s178] sm:$0xff]
        %v209 = vld [vmem:[%s178 + $0x8] sm:$0xff]
        %v210 = vld [vmem:[%s178 + $0x10] sm:$0xff]
        %v211 = vld [vmem:[%s178 + $0x18] sm:$0xff]
        %v212 = vld [vmem:[%s178 + $0x20] sm:$0xff]
        %v213 = vld [vmem:[%s178 + $0x28] sm:$0xff]
        %v214 = vld [vmem:[%s178 + $0x30] sm:$0xff]
        %v215 = vld [vmem:[%s178 + $0x38] sm:$0xff]
        %v216 = vld [vmem:[%s178 + $0x40] sm:$0xff]
        %v217 = vld [vmem:[%s178 + $0x48] sm:$0xff]
        %v218 = vld [vmem:[%s178 + $0x50] sm:$0xff]
        %v219 = vld [vmem:[%s178 + $0x58] sm:$0xff]
        %v220 = vld [vmem:[%s178 + $0x60] sm:$0xff]
        %v221 = vld [vmem:[%s178 + $0x68] sm:$0xff]
        %v222 = vld [vmem:[%s178 + $0x70] sm:$0xff]
        %v223 = vld [vmem:[%s178 + $0x78] sm:$0xff]
        %v224 = vld [vmem:[%s178 + $0x80] sm:$0xff]
        %v225 = vld [vmem:[%s178 + $0x88] sm:$0xff]
        %v226 = vld [vmem:[%s178 + $0x90] sm:$0xff]
        %v227 = vld [vmem:[%s178 + $0x98] sm:$0xff]
        %v228 = vld [vmem:[%s178 + $0xa0] sm:$0xff]
        %v229 = vld [vmem:[%s178 + $0xa8] sm:$0xff]
        %v230 = vld [vmem:[%s178 + $0xb0] sm:$0xff]
        %v231 = vld [vmem:[%s178 + $0xb8] sm:$0xff]
        %v232 = vld [vmem:[%s178 + $0xc0] sm:$0xff]
        %v233 = vld [vmem:[%s178 + $0xc8] sm:$0xff]
        %v234 = vld [vmem:[%s178 + $0xd0] sm:$0xff]
        %v235 = vld [vmem:[%s178 + $0xd8] sm:$0xff]
        %v236 = vld [vmem:[%s178 + $0xe0] sm:$0xff]
        %v237 = vld [vmem:[%s178 + $0xe8] sm:$0xff]
        %v238 = vld [vmem:[%s178 + $0xf0] sm:$0xff]
        %v239 = vld [vmem:[%s178 + $0xf8] sm:$0xff]
        %v240 = vld [vmem:[#allocation5] sm:$0xf]
        %v241 = vld [vmem:[#allocation5 + $0x4] sm:$0xf]
        %v242 = vld [vmem:[#allocation5 + $0x8] sm:$0xf]
        %v243 = vld [vmem:[#allocation5 + $0xc] sm:$0xf]
        %v244 = vld [vmem:[#allocation5 + $0x10] sm:$0xf]
        %v245 = vld [vmem:[#allocation5 + $0x14] sm:$0xf]
        %v246 = vld [vmem:[#allocation5 + $0x18] sm:$0xf]
        %v247 = vld [vmem:[#allocation5 + $0x1c] sm:$0xf]
        %v248 = vld [vmem:[#allocation5 + $0x20] sm:$0xf]
        %v249 = vld [vmem:[#allocation5 + $0x24] sm:$0xf]
        %v250 = vld [vmem:[#allocation5 + $0x28] sm:$0xf]
        %v251 = vld [vmem:[#allocation5 + $0x2c] sm:$0xf]
        %v252 = vld [vmem:[#allocation5 + $0x30] sm:$0xf]
        %v253 = vld [vmem:[#allocation5 + $0x34] sm:$0xf]
        %v254 = vld [vmem:[#allocation5 + $0x38] sm:$0xf]
        %v255 = vld [vmem:[#allocation5 + $0x3c] sm:$0xf]
        %v256 = vld [vmem:[#allocation5 + $0x40] sm:$0xf]
        %v257 = vld [vmem:[#allocation5 + $0x44] sm:$0xf]
        %v258 = vld [vmem:[#allocation5 + $0x48] sm:$0xf]
        %v259 = vld [vmem:[#allocation5 + $0x4c] sm:$0xf]
        %v260 = vld [vmem:[#allocation5 + $0x50] sm:$0xf]
        %v261 = vld [vmem:[#allocation5 + $0x54] sm:$0xf]
        %v262 = vld [vmem:[#allocation5 + $0x58] sm:$0xf]
        %v263 = vld [vmem:[#allocation5 + $0x5c] sm:$0xf]
        %v264 = vld [vmem:[#allocation5 + $0x60] sm:$0xf]
        %v265 = vld [vmem:[#allocation5 + $0x64] sm:$0xf]
        %v266 = vld [vmem:[#allocation5 + $0x68] sm:$0xf]
        %v267 = vld [vmem:[#allocation5 + $0x6c] sm:$0xf]
        %v268 = vld [vmem:[#allocation5 + $0x70] sm:$0xf]
        %v269 = vld [vmem:[#allocation5 + $0x74] sm:$0xf]
        %v270 = vld [vmem:[#allocation5 + $0x78] sm:$0xf]
        %v271 = vld [vmem:[#allocation5 + $0x7c] sm:$0xf]
        %v272 = vld [vmem:[%s2] sm:$0x1]
        %v274 = vlaneseq
        %v275 = vshrl.u32 %v274, 7
        %v276 = vsub.s32 0, %v275
        %v277 = vrot.slane %v272, %v276
        %v311 = vunpack.c.l.b16 %v208
        %v312 = vunpack.c.h.b16 %v208
        %v313 = vunpack.c.l.b16 %v209
        %v314 = vunpack.c.h.b16 %v209
        %v315 = vunpack.c.l.b16 %v210
        %v316 = vunpack.c.h.b16 %v210
        %v317 = vunpack.c.l.b16 %v211
        %v318 = vunpack.c.h.b16 %v211
        %v319 = vunpack.c.l.b16 %v212
        %v320 = vunpack.c.h.b16 %v212
        %v321 = vunpack.c.l.b16 %v213
        %v322 = vunpack.c.h.b16 %v213
        %v323 = vunpack.c.l.b16 %v214
        %v324 = vunpack.c.h.b16 %v214
        %v325 = vunpack.c.l.b16 %v215
        %v326 = vunpack.c.h.b16 %v215
        %v327 = vunpack.c.l.b16 %v216
        %v328 = vunpack.c.h.b16 %v216
        %v329 = vunpack.c.l.b16 %v217
        %v330 = vunpack.c.h.b16 %v217
        %v331 = vunpack.c.l.b16 %v218
        %v332 = vunpack.c.h.b16 %v218
        %v333 = vunpack.c.l.b16 %v219
        %v334 = vunpack.c.h.b16 %v219
        %v335 = vunpack.c.l.b16 %v220
        %v336 = vunpack.c.h.b16 %v220
        %v337 = vunpack.c.l.b16 %v221
        %v338 = vunpack.c.h.b16 %v221
        %v339 = vunpack.c.l.b16 %v222
        %v340 = vunpack.c.h.b16 %v222
        %v341 = vunpack.c.l.b16 %v223
        %v342 = vunpack.c.h.b16 %v223
        %v343 = vunpack.c.l.b16 %v224
        %v344 = vunpack.c.h.b16 %v224
        %v345 = vunpack.c.l.b16 %v225
        %v346 = vunpack.c.h.b16 %v225
        %v347 = vunpack.c.l.b16 %v226
        %v348 = vunpack.c.h.b16 %v226
        %v349 = vunpack.c.l.b16 %v227
        %v350 = vunpack.c.h.b16 %v227
        %v351 = vunpack.c.l.b16 %v228
        %v352 = vunpack.c.h.b16 %v228
        %v353 = vunpack.c.l.b16 %v229
        %v354 = vunpack.c.h.b16 %v229
        %v355 = vunpack.c.l.b16 %v230
        %v356 = vunpack.c.h.b16 %v230
        %v357 = vunpack.c.l.b16 %v231
        %v358 = vunpack.c.h.b16 %v231
        %v359 = vunpack.c.l.b16 %v232
        %v360 = vunpack.c.h.b16 %v232
        %v361 = vunpack.c.l.b16 %v233
        %v362 = vunpack.c.h.b16 %v233
        %v363 = vunpack.c.l.b16 %v234
        %v364 = vunpack.c.h.b16 %v234
        %v365 = vunpack.c.l.b16 %v235
        %v366 = vunpack.c.h.b16 %v235
        %v367 = vunpack.c.l.b16 %v236
        %v368 = vunpack.c.h.b16 %v236
        %v369 = vunpack.c.l.b16 %v237
        %v370 = vunpack.c.h.b16 %v237
        %v371 = vunpack.c.l.b16 %v238
        %v372 = vunpack.c.h.b16 %v238
        %v373 = vunpack.c.l.b16 %v239
        %v374 = vunpack.c.h.b16 %v239
        %v375 = vpack.c.b16 %v313, %v311
        %v376 = vpack.c.b16 %v314, %v312
        %v377 = vpack.c.b16 %v317, %v315
        %v378 = vpack.c.b16 %v318, %v316
        %v379 = vpack.c.b16 %v321, %v319
        %v380 = vpack.c.b16 %v322, %v320
        %v381 = vpack.c.b16 %v325, %v323
        %v382 = vpack.c.b16 %v326, %v324
        %v383 = vpack.c.b16 %v329, %v327
        %v384 = vpack.c.b16 %v330, %v328
        %v385 = vpack.c.b16 %v333, %v331
        %v386 = vpack.c.b16 %v334, %v332
        %v387 = vpack.c.b16 %v337, %v335
        %v388 = vpack.c.b16 %v338, %v336
        %v389 = vpack.c.b16 %v341, %v339
        %v390 = vpack.c.b16 %v342, %v340
        %v391 = vpack.c.b16 %v345, %v343
        %v392 = vpack.c.b16 %v346, %v344
        %v393 = vpack.c.b16 %v349, %v347
        %v394 = vpack.c.b16 %v350, %v348
        %v395 = vpack.c.b16 %v353, %v351
        %v396 = vpack.c.b16 %v354, %v352
        %v397 = vpack.c.b16 %v357, %v355
        %v398 = vpack.c.b16 %v358, %v356
        %v399 = vpack.c.b16 %v361, %v359
        %v400 = vpack.c.b16 %v362, %v360
        %v401 = vpack.c.b16 %v365, %v363
        %v402 = vpack.c.b16 %v366, %v364
        %v403 = vpack.c.b16 %v369, %v367
        %v404 = vpack.c.b16 %v370, %v368
        %v405 = vpack.c.b16 %v373, %v371
        %v406 = vpack.c.b16 %v374, %v372
        %v471 = vunpack.c.l.b16 %v240
        %v472 = vunpack.c.l.b16 %v241
        %v473 = vunpack.c.l.b16 %v242
        %v474 = vunpack.c.l.b16 %v243
        %v475 = vunpack.c.l.b16 %v244
        %v476 = vunpack.c.l.b16 %v245
        %v477 = vunpack.c.l.b16 %v246
        %v478 = vunpack.c.l.b16 %v247
        %v479 = vunpack.c.l.b16 %v248
        %v480 = vunpack.c.l.b16 %v249
        %v481 = vunpack.c.l.b16 %v250
        %v482 = vunpack.c.l.b16 %v251
        %v483 = vunpack.c.l.b16 %v252
        %v484 = vunpack.c.l.b16 %v253
        %v485 = vunpack.c.l.b16 %v254
        %v486 = vunpack.c.l.b16 %v255
        %v487 = vunpack.c.l.b16 %v256
        %v488 = vunpack.c.l.b16 %v257
        %v489 = vunpack.c.l.b16 %v258
        %v490 = vunpack.c.l.b16 %v259
        %v491 = vunpack.c.l.b16 %v260
        %v492 = vunpack.c.l.b16 %v261
        %v493 = vunpack.c.l.b16 %v262
        %v494 = vunpack.c.l.b16 %v263
        %v495 = vunpack.c.l.b16 %v264
        %v496 = vunpack.c.l.b16 %v265
        %v497 = vunpack.c.l.b16 %v266
        %v498 = vunpack.c.l.b16 %v267
        %v499 = vunpack.c.l.b16 %v268
        %v500 = vunpack.c.l.b16 %v269
        %v501 = vunpack.c.l.b16 %v270
        %v502 = vunpack.c.l.b16 %v271
        %v503 = vpack.c.b16 %v472, %v471
        %v504 = vpack.c.b16 %v474, %v473
        %v505 = vpack.c.b16 %v476, %v475
        %v506 = vpack.c.b16 %v478, %v477
        %v507 = vpack.c.b16 %v480, %v479
        %v508 = vpack.c.b16 %v482, %v481
        %v509 = vpack.c.b16 %v484, %v483
        %v510 = vpack.c.b16 %v486, %v485
        %v511 = vpack.c.b16 %v488, %v487
        %v512 = vpack.c.b16 %v490, %v489
        %v513 = vpack.c.b16 %v492, %v491
        %v514 = vpack.c.b16 %v494, %v493
        %v515 = vpack.c.b16 %v496, %v495
        %v516 = vpack.c.b16 %v498, %v497
        %v517 = vpack.c.b16 %v500, %v499
        %v518 = vpack.c.b16 %v502, %v501
        %535 = vmatprep.subr.bf16.mxu0 0
        %536 = vmatpush1.bf16.msra.mxu0 %v503
        %537 = vmatprep.subr.bf16.mxu0 0
        %538 = vmatpush1.bf16.msra.mxu0 %v504
        %539 = vmatprep.subr.bf16.mxu0 0
        %540 = vmatpush1.bf16.msra.mxu0 %v505
        %541 = vmatprep.subr.bf16.mxu0 0
        %542 = vmatpush1.bf16.msra.mxu0 %v506
        %543 = vmatprep.subr.bf16.mxu0 0
        %544 = vmatpush1.bf16.msra.mxu0 %v507
        %545 = vmatprep.subr.bf16.mxu0 0
        %546 = vmatpush1.bf16.msra.mxu0 %v508
        %547 = vmatprep.subr.bf16.mxu0 0
        %548 = vmatpush1.bf16.msra.mxu0 %v509
        %549 = vmatprep.subr.bf16.mxu0 0
        %550 = vmatpush1.bf16.msra.mxu0 %v510
        %551 = vmatprep.subr.bf16.mxu0 0
        %552 = vmatpush1.bf16.msra.mxu0 %v511
        %553 = vmatprep.subr.bf16.mxu0 0
        %554 = vmatpush1.bf16.msra.mxu0 %v512
        %555 = vmatprep.subr.bf16.mxu0 0
        %556 = vmatpush1.bf16.msra.mxu0 %v513
        %557 = vmatprep.subr.bf16.mxu0 0
        %558 = vmatpush1.bf16.msra.mxu0 %v514
        %559 = vmatprep.subr.bf16.mxu0 0
        %560 = vmatpush1.bf16.msra.mxu0 %v515
        %561 = vmatprep.subr.bf16.mxu0 0
        %562 = vmatpush1.bf16.msra.mxu0 %v516
        %563 = vmatprep.subr.bf16.mxu0 0
        %564 = vmatpush1.bf16.msra.mxu0 %v517
        %565 = vmatprep.subr.bf16.mxu0 0
        %566 = vmatpush1.bf16.msra.mxu0 %v518
        %567 = vmatprep.mubr.bf16.mxu0 %v376
        %568 = vmatmul.mubr.bf16.gmra.mrb[0].mxu0 %v375
        %v569 = vpop.f32.mrb[0].mxu0
        %v570 = vadd.f32 %v277, %v569
        %v571 = vpop.f32.mrb[0].mxu0
        %v572 = vpop.f32.mrb[0].mxu0
        %v573 = vadd.f32 %v277, %v572
        %v574 = vpop.f32.mrb[0].mxu0
        %575 = vmatprep.mubr.bf16.mxu0 %v378
        %576 = vmatmul.mubr.bf16.gmra.mrb[0].mxu0 %v377
        %v577 = vpop.f32.mrb[0].mxu0
        %v578 = vadd.f32 %v277, %v577
        %v579 = vpop.f32.mrb[0].mxu0
        %v580 = vpop.f32.mrb[0].mxu0
        %v581 = vadd.f32 %v277, %v580
        %v582 = vpop.f32.mrb[0].mxu0
        %583 = vmatprep.mubr.bf16.mxu0 %v380
        %584 = vmatmul.mubr.bf16.gmra.mrb[0].mxu0 %v379
        %v585 = vpop.f32.mrb[0].mxu0
        %v586 = vadd.f32 %v277, %v585
        %v587 = vpop.f32.mrb[0].mxu0
        %v588 = vpop.f32.mrb[0].mxu0
        %v589 = vadd.f32 %v277, %v588
        %v590 = vpop.f32.mrb[0].mxu0
        %591 = vmatprep.mubr.bf16.mxu0 %v382
        %592 = vmatmul.mubr.bf16.gmra.mrb[0].mxu0 %v381
        %v593 = vpop.f32.mrb[0].mxu0
        %v594 = vadd.f32 %v277, %v593
        %v595 = vpop.f32.mrb[0].mxu0
        %v596 = vpop.f32.mrb[0].mxu0
        %v597 = vadd.f32 %v277, %v596
        %v598 = vpop.f32.mrb[0].mxu0
        %599 = vmatprep.mubr.bf16.mxu0 %v384
        %600 = vmatmul.mubr.bf16.gmra.mrb[0].mxu0 %v383
        %v601 = vpop.f32.mrb[0].mxu0
        %v602 = vadd.f32 %v277, %v601
        %v603 = vpop.f32.mrb[0].mxu0
        %v604 = vpop.f32.mrb[0].mxu0
        %v605 = vadd.f32 %v277, %v604
        %v606 = vpop.f32.mrb[0].mxu0
        %607 = vmatprep.mubr.bf16.mxu0 %v386
        %608 = vmatmul.mubr.bf16.gmra.mrb[0].mxu0 %v385
        %v609 = vpop.f32.mrb[0].mxu0
        %v610 = vadd.f32 %v277, %v609
        %v611 = vpop.f32.mrb[0].mxu0
        %v612 = vpop.f32.mrb[0].mxu0
        %v613 = vadd.f32 %v277, %v612
        %v614 = vpop.f32.mrb[0].mxu0
        %615 = vmatprep.mubr.bf16.mxu0 %v388
        %616 = vmatmul.mubr.bf16.gmra.mrb[0].mxu0 %v387
        %v617 = vpop.f32.mrb[0].mxu0
        %v618 = vadd.f32 %v277, %v617
        %v619 = vpop.f32.mrb[0].mxu0
        %v620 = vpop.f32.mrb[0].mxu0
        %v621 = vadd.f32 %v277, %v620
        %v622 = vpop.f32.mrb[0].mxu0
        %623 = vmatprep.mubr.bf16.mxu0 %v390
        %624 = vmatmul.mubr.bf16.gmra.mrb[0].mxu0 %v389
        %v625 = vpop.f32.mrb[0].mxu0
        %v626 = vadd.f32 %v277, %v625
        %v627 = vpop.f32.mrb[0].mxu0
        %v628 = vpop.f32.mrb[0].mxu0
        %v629 = vadd.f32 %v277, %v628
        %v630 = vpop.f32.mrb[0].mxu0
        %631 = vmatprep.mubr.bf16.mxu0 %v392
        %632 = vmatmul.mubr.bf16.gmra.mrb[0].mxu0 %v391
        %v633 = vpop.f32.mrb[0].mxu0
        %v634 = vadd.f32 %v277, %v633
        %v635 = vpop.f32.mrb[0].mxu0
        %v636 = vpop.f32.mrb[0].mxu0
        %v637 = vadd.f32 %v277, %v636
        %v638 = vpop.f32.mrb[0].mxu0
        %639 = vmatprep.mubr.bf16.mxu0 %v394
        %640 = vmatmul.mubr.bf16.gmra.mrb[0].mxu0 %v393
        %v641 = vpop.f32.mrb[0].mxu0
        %v642 = vadd.f32 %v277, %v641
        %v643 = vpop.f32.mrb[0].mxu0
        %v644 = vpop.f32.mrb[0].mxu0
        %v645 = vadd.f32 %v277, %v644
        %v646 = vpop.f32.mrb[0].mxu0
        %647 = vmatprep.mubr.bf16.mxu0 %v396
        %648 = vmatmul.mubr.bf16.gmra.mrb[0].mxu0 %v395
        %v649 = vpop.f32.mrb[0].mxu0
        %v650 = vadd.f32 %v277, %v649
        %v651 = vpop.f32.mrb[0].mxu0
        %v652 = vpop.f32.mrb[0].mxu0
        %v653 = vadd.f32 %v277, %v652
        %v654 = vpop.f32.mrb[0].mxu0
        %655 = vmatprep.mubr.bf16.mxu0 %v398
        %656 = vmatmul.mubr.bf16.gmra.mrb[0].mxu0 %v397
        %v657 = vpop.f32.mrb[0].mxu0
        %v658 = vadd.f32 %v277, %v657
        %v659 = vpop.f32.mrb[0].mxu0
        %v660 = vpop.f32.mrb[0].mxu0
        %v661 = vadd.f32 %v277, %v660
        %v662 = vpop.f32.mrb[0].mxu0
        %663 = vmatprep.mubr.bf16.mxu0 %v400
        %664 = vmatmul.mubr.bf16.gmra.mrb[0].mxu0 %v399
        %v665 = vpop.f32.mrb[0].mxu0
        %v666 = vadd.f32 %v277, %v665
        %v667 = vpop.f32.mrb[0].mxu0
        %v668 = vpop.f32.mrb[0].mxu0
        %v669 = vadd.f32 %v277, %v668
        %v670 = vpop.f32.mrb[0].mxu0
        %671 = vmatprep.mubr.bf16.mxu0 %v402
        %672 = vmatmul.mubr.bf16.gmra.mrb[0].mxu0 %v401
        %v673 = vpop.f32.mrb[0].mxu0
        %v674 = vadd.f32 %v277, %v673
        %v675 = vpop.f32.mrb[0].mxu0
        %v676 = vpop.f32.mrb[0].mxu0
        %v677 = vadd.f32 %v277, %v676
        %v678 = vpop.f32.mrb[0].mxu0
        %679 = vmatprep.mubr.bf16.mxu0 %v404
        %680 = vmatmul.mubr.bf16.gmra.mrb[0].mxu0 %v403
        %v681 = vpop.f32.mrb[0].mxu0
        %v682 = vadd.f32 %v277, %v681
        %v683 = vpop.f32.mrb[0].mxu0
        %v684 = vpop.f32.mrb[0].mxu0
        %v685 = vadd.f32 %v277, %v684
        %v686 = vpop.f32.mrb[0].mxu0
        %687 = vmatprep.mubr.bf16.mxu0 %v406
        %688 = vmatmul.mubr.bf16.gmra.mrb[0].mxu0 %v405
        %v689 = vpop.f32.mrb[0].mxu0
        %v690 = vadd.f32 %v277, %v689
        %v691 = vpop.f32.mrb[0].mxu0
        %v692 = vpop.f32.mrb[0].mxu0
        %v693 = vadd.f32 %v277, %v692
        %v694 = vpop.f32.mrb[0].mxu0
        %695 = vdwg.mxu0
        %696 = vst [vmem:[%s204] sm:$0xff] %v570
        %697 = vst [vmem:[%s204 + $0x8] sm:$0xff] %v573
        %698 = vst [vmem:[%s204 + $0x10] sm:$0xff] %v578
        %699 = vst [vmem:[%s204 + $0x18] sm:$0xff] %v581
        %700 = vst [vmem:[%s204 + $0x20] sm:$0xff] %v586
        %701 = vst [vmem:[%s204 + $0x28] sm:$0xff] %v589
        %702 = vst [vmem:[%s204 + $0x30] sm:$0xff] %v594
        %703 = vst [vmem:[%s204 + $0x38] sm:$0xff] %v597
        %704 = vst [vmem:[%s204 + $0x40] sm:$0xff] %v602
        %705 = vst [vmem:[%s204 + $0x48] sm:$0xff] %v605
        %706 = vst [vmem:[%s204 + $0x50] sm:$0xff] %v610
        %707 = vst [vmem:[%s204 + $0x58] sm:$0xff] %v613
        %708 = vst [vmem:[%s204 + $0x60] sm:$0xff] %v618
        %709 = vst [vmem:[%s204 + $0x68] sm:$0xff] %v621
        %710 = vst [vmem:[%s204 + $0x70] sm:$0xff] %v626
        %711 = vst [vmem:[%s204 + $0x78] sm:$0xff] %v629
        %712 = vst [vmem:[%s204 + $0x80] sm:$0xff] %v634
        %713 = vst [vmem:[%s204 + $0x88] sm:$0xff] %v637
        %714 = vst [vmem:[%s204 + $0x90] sm:$0xff] %v642
        %715 = vst [vmem:[%s204 + $0x98] sm:$0xff] %v645
        %716 = vst [vmem:[%s204 + $0xa0] sm:$0xff] %v650
        %717 = vst [vmem:[%s204 + $0xa8] sm:$0xff] %v653
        %718 = vst [vmem:[%s204 + $0xb0] sm:$0xff] %v658
        %719 = vst [vmem:[%s204 + $0xb8] sm:$0xff] %v661
        %720 = vst [vmem:[%s204 + $0xc0] sm:$0xff] %v666
        %721 = vst [vmem:[%s204 + $0xc8] sm:$0xff] %v669
        %722 = vst [vmem:[%s204 + $0xd0] sm:$0xff] %v674
        %723 = vst [vmem:[%s204 + $0xd8] sm:$0xff] %v677
        %724 = vst [vmem:[%s204 + $0xe0] sm:$0xff] %v682
        %725 = vst [vmem:[%s204 + $0xe8] sm:$0xff] %v685
        %726 = vst [vmem:[%s204 + $0xf0] sm:$0xff] %v690
        %727 = vst [vmem:[%s204 + $0xf8] sm:$0xff] %v693
        %s728 = sand.u32 %s97, 1
        %s729 = scalar_lea.sflag [#allocation4], %s728
        %s730 = sand.u32 %s97, 1
        %s731 = smul.addr %s730, 256
        %s732 = scalar_lea.vmem [#allocation7], %s731
        // Predicated region
        $region41: #{tpu_custom_call.1} parent=31 // pred_check
          %p733 = pneg %p107
        $region42: #{tpu_custom_call.1} parent=31 // pred_check_branch
          %735 = sbr.rel (%p733) target = $region44
        $region43: #{tpu_custom_call.1} parent=31 // pred_region
          %s736 = smul.u32 32, %s21
          %s738 = ssub.s32 4096, 4096
          %739 = vsyncadd %s729, %s738
          %s740 = smul.addr %s736, 128
          %s741 = scalar_lea.hbm %s3, %s740
          %s742 = sshll.u32 %s732, 4
          %s743 = int_to_ptr.vmem [resolvable:$true] %s742
          %748 = dma.vmem_to_hbm [thread:$0]  %s743, 4096, %s741, %s729, 128, 128, 8
        $region44: #{tpu_custom_call.1} parent=31 // pred_fallthru
          _
      $region32: #{tpu_custom_call.1} parent=5 // pred_fallthru
        _
      %p749 = scmp.le.s32.totalorder 2, %s16
      // Predicated region
      $region45: #{tpu_custom_call.1} parent=5 // pred_check
        %p750 = pneg %p749
      $region46: #{tpu_custom_call.1} parent=5 // pred_check_branch
        %752 = sbr.rel (%p750) target = $region48
      $region47: #{tpu_custom_call.1} parent=5 // pred_region
        %s753 = ssub.s32 %s16, 2
        // Predicated region
        $region49: #{tpu_custom_call.1} parent=47 // pred_check
          %p754 = pneg %p113
        $region50: #{tpu_custom_call.1} parent=47 // pred_check_branch
          %756 = sbr.rel (%p754) target = $region52
        $region51: #{tpu_custom_call.1} parent=47 // pred_region
          %s757 = sand.u32 %s98, 1
          %s758 = scalar_lea.sflag [#allocation4], %s757
          %s759 = sand.u32 %s98, 1
          %s760 = smul.addr %s759, 256
          %s761 = scalar_lea.vmem [#allocation7], %s760
          %762 = dma.done %s758, 4096
        $region52: #{tpu_custom_call.1} parent=47 // pred_fallthru
          _
      $region48: #{tpu_custom_call.1} parent=5 // pred_fallthru
        _
    $region6: #{tpu_custom_call.1} parent=1 // loop_footer
      %s20 = sadd.s32 1, %s16
    $region7: #{tpu_custom_call.1} parent=1 // loop_footer_branch
      %15 = sbr.rel target = $region3
    $region8: #{tpu_custom_call.1} parent=1 // loop_exit
      _
    %763 = vsyncpa [#allocation3], 1
    %s764 = scalar_lea.sflag [#allocation3], 1
    %765 = vsyncpa %s764, 1
    %766 = vsyncpa [#allocation6], 1
    %767 = vsyncpa [#allocation4], 1
    %s768 = scalar_lea.sflag [#allocation4], 1
    %769 = vsyncpa %s768, 1

</llo_original>
